<compile_context>
chip_gen: v7x
topology: tpu7x:2x2x1
jax: 0.10.0
libtpu: 0.0.40
codegen_flags: <defaults>
</compile_context>

<pallas_src>
import jax
import jax.numpy as jnp
from jax.experimental import pallas as pl
from jax.experimental.pallas import tpu as pltpu


TEMPERATURE = 0.5
NEG_INF = -1e30          # fill for padded vocab columns (exp() underflows to 0)


def _cdiv(a, b):
    return (a + b - 1) // b


def _round_up(x, m):
    return _cdiv(x, m) * m


def _tpu_vmem_bytes():
    """Best-effort trace-time VMEM capacity query (safe conservative fallback)."""
    vmem = 64 << 20                      # conservative (v7x-sized) default
    try:
        info = pltpu.get_tpu_info()
        vmem = int(getattr(info, "vmem_capacity_bytes", vmem)) or vmem
    except Exception:
        pass
    return vmem


# ---------------------------------------------------------------------------
# One-time parameter preparation (model-load time).
# ---------------------------------------------------------------------------
def prepare_generator_params(weight, bias, *, matmul_dtype=jnp.bfloat16):
    """weight: [hidden, input] (PyTorch nn.Linear layout), bias: [hidden].

    Returns (w_t, b2, hidden):
      w_t: [input, hidden_pad] matmul_dtype  -- transposed once, 1/T folded in,
                                                hidden padded to a 128 multiple.
      b2:  [1, hidden_pad]     float32       -- 1/T folded in, padded columns
                                                filled with NEG_INF (mask).
      hidden: original (unpadded) hidden size, for slicing the output.
    """
    hidden, in_size = weight.shape
    hidden_pad = _round_up(hidden, 128)
    inv_t = 1.0 / TEMPERATURE

    w_t = (weight.T * inv_t).astype(matmul_dtype)                   # [in, hidden]
    w_t = jnp.pad(w_t, ((0, 0), (0, hidden_pad - hidden)))          # zero cols
    b2 = (bias * inv_t).astype(jnp.float32).reshape(1, hidden)
    b2 = jnp.pad(b2, ((0, 0), (0, hidden_pad - hidden)),
                 constant_values=NEG_INF)                           # mask pad
    return w_t, b2, hidden


# ---------------------------------------------------------------------------
# Kernel: fused (x @ W_t + b) -> log_softmax over the hidden axis.
# Temperature is already folded into W_t / b.  Math in f32, cast at the store.
# ---------------------------------------------------------------------------
def generator_kernel(x_ref, w_ref, b_ref, o_ref):
    z = jnp.dot(x_ref[...].astype(w_ref.dtype), w_ref[...],
                preferred_element_type=jnp.float32)
    z = z + b_ref[...]                         # broadcast [1, Hp] over [TB, Hp]
    # Numerically-stable log-softmax (padded columns are ~-inf -> exp == 0).
    m = jnp.max(z, axis=-1, keepdims=True)
    s = z - m
    lse = jnp.log(jnp.sum(jnp.exp(s), axis=-1, keepdims=True))
    o_ref[...] = (s - lse).astype(o_ref.dtype)


# ---------------------------------------------------------------------------
# Wrapper: batch-tiled, megacore-parallel pallas_call.
# ---------------------------------------------------------------------------
def generator_forward(x, w_t, b2, hidden, *, block_b=None,
                      out_dtype=jnp.bfloat16, strip_padding=True):
    """x: [B, input_size]; (w_t, b2, hidden) from prepare_generator_params.

    out_dtype defaults to bfloat16 (halves the dominant output HBM stream);
    pass jnp.float32 for full-precision output.
    """
    B, in_size = x.shape
    hidden_pad = w_t.shape[1]
    x_itemsize = jnp.dtype(x.dtype).itemsize
    w_itemsize = jnp.dtype(w_t.dtype).itemsize
    out_itemsize = jnp.dtype(out_dtype).itemsize

    # --- generation-aware VMEM budget -------------------------------------
    vmem_cap = _tpu_vmem_bytes()                  # 64 MiB v7x / 128 MiB v5e,v6e
    headroom = max(16 << 20, vmem_cap // 8)       # Mosaic internal scratch etc.
    usable = vmem_cap - headroom                  # ~48 MiB v7x / ~112 MiB v6e

    # Honest accounting: 1x W + 1x b (Buffered(1)), 2x x, 2x out (double-
    # buffered streams), plus ~3 live f32 [block_b, hidden_pad] temporaries
    # from the log-softmax (z, s, exp(s)).
    fixed_bytes = in_size * hidden_pad * w_itemsize + hidden_pad * 4
    per_row = (2 * in_size * x_itemsize
               + 2 * hidden_pad * out_itemsize
               + 3 * hidden_pad * 4)

    # --- batch tile selection ----------------------------------------------
    if block_b is None:
        budget_rows = max((usable - fixed_bytes) // per_row, 8)
        block_b = int(min(budget_rows, 1024))
    block_b = max(8, (block_b // 8) * 8)

    b_ceil = _round_up(B, 8)
    block_b = min(block_b, b_ceil)
    # v7x-class parts (<=64 MiB VMEM) have 2 TensorCores: make sure the
    # "parallel" batch axis has at least 2 tiles so the second core works.
    if vmem_cap <= (64 << 20) and b_ceil > 8:
        block_b = min(block_b, _round_up(_cdiv(B, 2), 8))
    # Minimise batch padding: spread rows evenly over the chosen tile count.
    grid_b = _cdiv(B, block_b)
    block_b = _round_up(_cdiv(B, grid_b), 8)
    b_pad = grid_b * block_b
    if b_pad != B:
        x = jnp.pad(x, ((0, b_pad - B), (0, 0)))

    vmem_limit = int(min(max(fixed_bytes + block_b * per_row + (4 << 20),
                             16 << 20), usable))

    # --- pallas_call --------------------------------------------------------
    def _call(single_buffer_wb):
        if single_buffer_wb:
            # Grid-invariant blocks: no point double-buffering the big weight.
            w_spec = pl.BlockSpec((in_size, hidden_pad), lambda i: (0, 0),
                                  pipeline_mode=pl.Buffered(1))
            b_spec = pl.BlockSpec((1, hidden_pad), lambda i: (0, 0),
                                  pipeline_mode=pl.Buffered(1))
        else:
            w_spec = pl.BlockSpec((in_size, hidden_pad), lambda i: (0, 0))
            b_spec = pl.BlockSpec((1, hidden_pad), lambda i: (0, 0))
        return pl.pallas_call(
            generator_kernel,
            out_shape=jax.ShapeDtypeStruct((b_pad, hidden_pad), out_dtype),
            grid_spec=pltpu.PrefetchScalarGridSpec(
                num_scalar_prefetch=0,
                grid=(grid_b,),
                in_specs=[
                    pl.BlockSpec((block_b, in_size), lambda i: (i, 0)),  # x streams
                    w_spec,                                              # W pinned
                    b_spec,                                              # b pinned
                ],
                out_specs=pl.BlockSpec((block_b, hidden_pad), lambda i: (i, 0)),
            ),
            compiler_params=pltpu.CompilerParams(
                dimension_semantics=("parallel",),   # megacore: shard batch tiles
                vmem_limit_bytes=vmem_limit,
            ),
        )(x, w_t, b2)

    try:
        out = _call(single_buffer_wb=True)
        jax.block_until_ready(out)
    except Exception:
        # Fallback: default double-buffering of the grid-invariant W/b blocks.
        out = _call(single_buffer_wb=False)

    # Strip padding only when padding actually happened (otherwise no extra
    # HBM copy is emitted at all).
    if strip_padding and (b_pad != B or hidden_pad != hidden):
        out = out[:B, :hidden]
    return out


# ---------------------------------------------------------------------------
# Pure-JAX reference (exact PyTorch module semantics).
# ---------------------------------------------------------------------------
def generator_reference(x, weight, bias):
    z = x @ weight.T + bias
    z = z / TEMPERATURE
    return jax.nn.log_softmax(z, axis=-1)


if __name__ == "__main__":
    # NOTE: at these demo shapes (8x32x32) fixed kernel overhead dominates;
    # the tiling/parallelism only pays off at production B / hidden sizes.
    input_size = 32
    hidden_size = 32
    batch = 8

    key = jax.random.PRNGKey(0)
    kx, kw, kb = jax.random.split(key, 3)

    x = jax.random.normal(kx, (batch, input_size), dtype=jnp.float32)
    # Deterministic nn.Linear-style init: U(-1/sqrt(in), 1/sqrt(in))
    bound = 1.0 / (input_size ** 0.5)
    weight = jax.random.uniform(kw, (hidden_size, input_size),
                                minval=-bound, maxval=bound, dtype=jnp.float32)
    bias = jax.random.uniform(kb, (hidden_size,),
                              minval=-bound, maxval=bound, dtype=jnp.float32)

    ref = generator_reference(x, weight, bias)

    # 1) f32-matmul / f32-output path: must match the reference tightly
    #    (validates tiling, hidden padding/masking, fused log-softmax).
    w_f32, b_f32, hid = prepare_generator_params(weight, bias,
                                                 matmul_dtype=jnp.float32)
    out_f32 = jax.block_until_ready(
        generator_forward(x, w_f32, b_f32, hid, out_dtype=jnp.float32))
    assert out_f32.shape == (batch, hidden_size)
    assert jnp.allclose(out_f32, ref, atol=1e-5, rtol=1e-5), "f32 mismatch vs reference"

    # 2) Recommended production path: bf16 MXU weights + bf16 output
    #    (math in f32 in-kernel); looser tolerance for bf16 rounding.
    w_bf16, b_bf16, hid = prepare_generator_params(weight, bias,
                                                   matmul_dtype=jnp.bfloat16)
    out_bf16 = jax.block_until_ready(
        generator_forward(x, w_bf16, b_bf16, hid))       # default bf16 output
    assert out_bf16.shape == (batch, hidden_size)
    assert jnp.allclose(out_bf16.astype(jnp.float32), ref,
                        atol=5e-2, rtol=5e-2), "bf16 mismatch vs reference"

    print("KERNEL_OK")
</pallas_src>

<mosaic_0001>
module attributes {stable_mosaic.version = 11 : i64} {
  func.func @generator_kernel(%arg0: i32, %arg1: memref<8x32xf32, #tpu.memory_space<vmem>>, %arg2: memref<32x128xf32, #tpu.memory_space<vmem>>, %arg3: memref<1x128xf32, #tpu.memory_space<vmem>>, %arg4: memref<8x128xf32, #tpu.memory_space<vmem>>) attributes {dimension_semantics = [#tpu.dimension_semantics<parallel>], iteration_bounds = array<i64: 1>, scalar_prefetch = 0 : i64, scratch_operands = 0 : i64, tpu.core_type = #tpu.core_type<tc>, window_params = [{transform_indices = @transform_0, window_bounds = array<i64: 8, 32>}, {pipeline_mode = #tpu.pipeline_mode<synchronous>, transform_indices = @transform_1, window_bounds = array<i64: 32, 128>}, {pipeline_mode = #tpu.pipeline_mode<synchronous>, transform_indices = @transform_2, window_bounds = array<i64: 1, 128>}, {transform_indices = @transform_3, window_bounds = array<i64: 8, 128>}]} {
    %c0 = arith.constant 0 : index
    %c0_0 = arith.constant 0 : index
    %0 = vector.load %arg1[%c0, %c0_0] : memref<8x32xf32, #tpu.memory_space<vmem>>, vector<8x32xf32>
    %c0_1 = arith.constant 0 : index
    %c0_2 = arith.constant 0 : index
    %1 = vector.load %arg2[%c0_1, %c0_2] : memref<32x128xf32, #tpu.memory_space<vmem>>, vector<32x128xf32>
    %cst = arith.constant dense<0.000000e+00> : vector<8x128xf32>
    %2 = tpu.matmul %0, %1, %cst {dimension_numbers = #tpu.dot_dimension_numbers<[1], [0], [0], [1], [0, 0, 1, 1], [], []>} : vector<8x32xf32>, vector<32x128xf32>, vector<8x128xf32> -> vector<8x128xf32>
    %c0_3 = arith.constant 0 : index
    %c0_4 = arith.constant 0 : index
    %3 = vector.load %arg3[%c0_3, %c0_4] : memref<1x128xf32, #tpu.memory_space<vmem>>, vector<1x128xf32>
    %4 = vector.broadcast %3 : vector<1x128xf32> to vector<8x128xf32>
    %5 = arith.addf %2, %4 : vector<8x128xf32>
    %cst_5 = arith.constant dense<0xFF800000> : vector<8xf32>
    %6 = vector.multi_reduction <maximumf>, %5, %cst_5 [1] : vector<8x128xf32> to vector<8xf32>
    %7 = vector.shape_cast %6 : vector<8xf32> to vector<8x1xf32>
    %8 = vector.broadcast %7 : vector<8x1xf32> to vector<8x128xf32>
    %9 = arith.subf %5, %8 : vector<8x128xf32>
    %10 = math.exp %9 : vector<8x128xf32>
    %cst_6 = arith.constant dense<0.000000e+00> : vector<8xf32>
    %11 = vector.multi_reduction <add>, %10, %cst_6 [1] : vector<8x128xf32> to vector<8xf32>
    %12 = vector.shape_cast %11 : vector<8xf32> to vector<8x1xf32>
    %13 = math.log %12 : vector<8x1xf32>
    %14 = vector.broadcast %13 : vector<8x1xf32> to vector<8x128xf32>
    %15 = arith.subf %9, %14 : vector<8x128xf32>
    %c0_7 = arith.constant 0 : index
    %c0_8 = arith.constant 0 : index
    %16 = vector.load %arg4[%c0_7, %c0_8] : memref<8x128xf32, #tpu.memory_space<vmem>>, vector<8x128xf32>
    tpu.vector_store %arg4[%c0_7, %c0_8], %15 {strides = array<i32>} : memref<8x128xf32, #tpu.memory_space<vmem>>, vector<8x128xf32>,
    return
  }
  func.func @transform_0(%arg0: i32) -> (i32, i32) {
    %c0_i32 = arith.constant 0 : i32
    %c0_i32_0 = arith.constant 0 : i32
    return %arg0, %c0_i32 : i32, i32
  }
  func.func @transform_1(%arg0: i32) -> (i32, i32) {
    %c0_i32 = arith.constant 0 : i32
    %c0_i32_0 = arith.constant 0 : i32
    %c0_i32_1 = arith.constant 0 : i32
    return %c0_i32, %c0_i32_0 : i32, i32
  }
  func.func @transform_2(%arg0: i32) -> (i32, i32) {
    %c0_i32 = arith.constant 0 : i32
    %c0_i32_0 = arith.constant 0 : i32
    %c0_i32_1 = arith.constant 0 : i32
    return %c0_i32, %c0_i32_0 : i32, i32
  }
  func.func @transform_3(%arg0: i32) -> (i32, i32) {
    %c0_i32 = arith.constant 0 : i32
    %c0_i32_0 = arith.constant 0 : i32
    return %arg0, %c0_i32 : i32, i32
  }
}

module attributes {stable_mosaic.version = 11 : i64} {
  func.func @generator_kernel(%arg0: i32, %arg1: memref<8x32xf32, #tpu.memory_space<vmem>>, %arg2: memref<32x128xf32, #tpu.memory_space<vmem>>, %arg3: memref<1x128xf32, #tpu.memory_space<vmem>>, %arg4: memref<8x128xf32, #tpu.memory_space<vmem>>) attributes {dimension_semantics = [#tpu.dimension_semantics<parallel>], iteration_bounds = array<i64: 1>, scalar_prefetch = 0 : i64, scratch_operands = 0 : i64, tpu.core_type = #tpu.core_type<tc>, window_params = [{transform_indices = @transform_0, window_bounds = array<i64: 8, 32>}, {pipeline_mode = #tpu.pipeline_mode<synchronous>, transform_indices = @transform_1, window_bounds = array<i64: 32, 128>}, {pipeline_mode = #tpu.pipeline_mode<synchronous>, transform_indices = @transform_2, window_bounds = array<i64: 1, 128>}, {transform_indices = @transform_3, window_bounds = array<i64: 8, 128>}]} {
    %c0 = arith.constant 0 : index
    %c0_0 = arith.constant 0 : index
    %0 = vector.load %arg1[%c0, %c0_0] : memref<8x32xf32, #tpu.memory_space<vmem>>, vector<8x32xf32>
    %c0_1 = arith.constant 0 : index
    %c0_2 = arith.constant 0 : index
    %1 = vector.load %arg2[%c0_1, %c0_2] : memref<32x128xf32, #tpu.memory_space<vmem>>, vector<32x128xf32>
    %cst = arith.constant dense<0.000000e+00> : vector<8x128xf32>
    %2 = tpu.matmul %0, %1, %cst {dimension_numbers = #tpu.dot_dimension_numbers<[1], [0], [0], [1], [0, 0, 1, 1], [], []>} : vector<8x32xf32>, vector<32x128xf32>, vector<8x128xf32> -> vector<8x128xf32>
    %c0_3 = arith.constant 0 : index
    %c0_4 = arith.constant 0 : index
    %3 = vector.load %arg3[%c0_3, %c0_4] : memref<1x128xf32, #tpu.memory_space<vmem>>, vector<1x128xf32>
    %4 = vector.broadcast %3 : vector<1x128xf32> to vector<8x128xf32>
    %5 = arith.addf %2, %4 : vector<8x128xf32>
    %cst_5 = arith.constant dense<0xFF800000> : vector<8xf32>
    %6 = vector.multi_reduction <maximumf>, %5, %cst_5 [1] : vector<8x128xf32> to vector<8xf32>
    %7 = vector.shape_cast %6 : vector<8xf32> to vector<8x1xf32>
    %8 = vector.broadcast %7 : vector<8x1xf32> to vector<8x128xf32>
    %9 = arith.subf %5, %8 : vector<8x128xf32>
    %10 = math.exp %9 : vector<8x128xf32>
    %cst_6 = arith.constant dense<0.000000e+00> : vector<8xf32>
    %11 = vector.multi_reduction <add>, %10, %cst_6 [1] : vector<8x128xf32> to vector<8xf32>
    %12 = vector.shape_cast %11 : vector<8xf32> to vector<8x1xf32>
    %13 = math.log %12 : vector<8x1xf32>
    %14 = vector.broadcast %13 : vector<8x1xf32> to vector<8x128xf32>
    %15 = arith.subf %9, %14 : vector<8x128xf32>
    %c0_7 = arith.constant 0 : index
    %c0_8 = arith.constant 0 : index
    %16 = vector.load %arg4[%c0_7, %c0_8] : memref<8x128xf32, #tpu.memory_space<vmem>>, vector<8x128xf32>
    tpu.vector_store %arg4[%c0_7, %c0_8], %15 {strides = array<i32>} : memref<8x128xf32, #tpu.memory_space<vmem>>, vector<8x128xf32>,
    return
  }
  func.func @transform_0(%arg0: i32) -> (i32, i32) {
    %c0_i32 = arith.constant 0 : i32
    %c0_i32_0 = arith.constant 0 : i32
    return %arg0, %c0_i32 : i32, i32
  }
  func.func @transform_1(%arg0: i32) -> (i32, i32) {
    %c0_i32 = arith.constant 0 : i32
    %c0_i32_0 = arith.constant 0 : i32
    %c0_i32_1 = arith.constant 0 : i32
    return %c0_i32, %c0_i32_0 : i32, i32
  }
  func.func @transform_2(%arg0: i32) -> (i32, i32) {
    %c0_i32 = arith.constant 0 : i32
    %c0_i32_0 = arith.constant 0 : i32
    %c0_i32_1 = arith.constant 0 : i32
    return %c0_i32, %c0_i32_0 : i32, i32
  }
  func.func @transform_3(%arg0: i32) -> (i32, i32) {
    %c0_i32 = arith.constant 0 : i32
    %c0_i32_0 = arith.constant 0 : i32
    return %arg0, %c0_i32 : i32, i32
  }
}

</mosaic_0001>

<llo_original>
// kernel: tpu_custom_call.1
$region0: #{tpu_custom_call.1}
  #allocation0 [shape = 'u32[]', space=smem, size = 0x4, offset = 0x4, fixed_abs, tag = 'smem constant byte address 0x4 - core index']
  #allocation1 [shape = 'u32[144,128]{1,0:T(1,128)}', space=vmem, size = 0x12000, scoped, tag = 'internal scratch']
  %s0 = inlined_call_operand.hbm [shape: f32[8,32], index: 0, kind: input, shape index: {}]
  %s1 = inlined_call_operand.hbm [shape: f32[32,128], index: 1, kind: input, shape index: {}]
  %s2 = inlined_call_operand.vmem [shape: f32[1,128], index: 2, kind: input, shape index: {}]
  %s3 = inlined_call_operand.hbm [shape: f32[8,128], index: 3, kind: output, shape index: {}]
  %s4 = sld [smem:[#allocation0]]
  $region30: #{tpu_custom_call.1} parent=0
    _
  %s6 = ssub.s32 1, %s4
  %s7 = scalar_select 0, %s6, %s4
  $region1: #{tpu_custom_call.1} parent=0
    #allocation2 [shape = 'u8[4096]{0}', space=vmem, size = 0x1000, scoped, tag = 'input window, operand 0, single buffered']
    #allocation3 [shape = 's32[1]{0}', space=sflag, size = 0x4, scoped, tag = 'scoped memory for tpu_custom_call.1']
    #allocation4 [shape = 's32[1]{0}', space=sflag, size = 0x4, scoped, tag = 'scoped memory for tpu_custom_call.1']
    #allocation5 [shape = 'u8[16384]{0}', space=vmem, size = 0x4000, scoped, tag = 'input window, operand 1, single buffered']
    #allocation6 [shape = 's32[1]{0}', space=sflag, size = 0x4, scoped, tag = 'scoped memory for tpu_custom_call.1']
    #allocation7 [shape = 'u8[4096]{0}', space=vmem, size = 0x1000, scoped, tag = 'output window, operand 0, single buffered']
    %8 = vsyncpa [#allocation3], 0
    %9 = vsyncpa [#allocation6], 0
    %10 = vsyncpa [#allocation4], 0
    // Predicated region
    $region2: #{tpu_custom_call.1} parent=1 // pred_check
      _
    $region3: #{tpu_custom_call.1} parent=1 // pred_check_branch
      %12 = sbr.rel (0) target = $region5
    $region4: #{tpu_custom_call.1} parent=1 // pred_region
      %s14 = ssub.s32 128, 128
      %15 = vsyncadd [#allocation3], %s14
      %s17 = sshll.u32 [#allocation2], 4
      %s18 = int_to_ptr.vmem [resolvable:$true] %s17
      %20 = dma.hbm_to_vmem [thread:$0]  %s0, 128, %s18, [#allocation3]
    $region5: #{tpu_custom_call.1} parent=1 // pred_fallthru
      _
    // Predicated region
    $region6: #{tpu_custom_call.1} parent=1 // pred_check
      _
    $region7: #{tpu_custom_call.1} parent=1 // pred_check_branch
      %22 = sbr.rel (0) target = $region9
    $region8: #{tpu_custom_call.1} parent=1 // pred_region
      %s24 = ssub.s32 512, 512
      %25 = vsyncadd [#allocation6], %s24
      %s26 = sshll.u32 [#allocation5], 4
      %s27 = int_to_ptr.vmem [resolvable:$true] %s26
      %32 = dma.hbm_to_vmem [thread:$0]  %s1, 512, %s27, [#allocation6], 128, 128, 8
    $region9: #{tpu_custom_call.1} parent=1 // pred_fallthru
      _
    // Predicated region
    $region10: #{tpu_custom_call.1} parent=1 // pred_check
      _
    $region11: #{tpu_custom_call.1} parent=1 // pred_check_branch
      %34 = sbr.rel (0) target = $region13
    $region12: #{tpu_custom_call.1} parent=1 // pred_region
      _
    $region13: #{tpu_custom_call.1} parent=1 // pred_fallthru
      _
    // Predicated region
    $region14: #{tpu_custom_call.1} parent=1 // pred_check
      _
    $region15: #{tpu_custom_call.1} parent=1 // pred_check_branch
      %36 = sbr.rel (0) target = $region17
    $region16: #{tpu_custom_call.1} parent=1 // pred_region
      %37 = dma.done [#allocation3], 128
    $region17: #{tpu_custom_call.1} parent=1 // pred_fallthru
      _
    // Predicated region
    $region18: #{tpu_custom_call.1} parent=1 // pred_check
      _
    $region19: #{tpu_custom_call.1} parent=1 // pred_check_branch
      %39 = sbr.rel (0) target = $region21
    $region20: #{tpu_custom_call.1} parent=1 // pred_region
      %40 = dma.done [#allocation6], 512
    $region21: #{tpu_custom_call.1} parent=1 // pred_fallthru
      _
    %v41 = vld [vmem:[#allocation2] sm:$0xff]
    %v42 = vld [vmem:[#allocation5] sm:$0xff]
    %v43 = vld [vmem:[#allocation5 + $0x8] sm:$0xff]
    %v44 = vld [vmem:[#allocation5 + $0x10] sm:$0xff]
    %v45 = vld [vmem:[#allocation5 + $0x18] sm:$0xff]
    %v46 = vld [vmem:[%s2] sm:$0x1]
    %v48 = vlaneseq
    %v49 = vshrl.u32 %v48, 7
    %v50 = vsub.s32 0, %v49
    %v51 = vrot.slane %v46, %v50
    %vm53 = vcmask 261120
    %v55 = vsel %vm53, %v41, 0
    %57 = vmatprep.subr.mxu0 0.0
    %58 = vmatpush1.msra.mxu0 %v42
    %59 = vmatprep.subr.mxu0 0.0
    %60 = vmatpush1.msra.mxu0 %v43
    %61 = vmatprep.subr.mxu0 0.0
    %62 = vmatpush1.msra.mxu0 %v44
    %63 = vmatprep.subr.mxu0 0.0
    %64 = vmatpush1.msra.mxu0 %v45
    %65 = vmatprep.subr.mxu0 0.0
    %66 = vmatpush1.msra.mxu0 0.0
    %67 = vmatprep.subr.mxu0 0.0
    %68 = vmatpush1.msra.mxu0 0.0
    %69 = vmatprep.subr.mxu0 0.0
    %70 = vmatpush1.msra.mxu0 0.0
    %71 = vmatprep.subr.mxu0 0.0
    %72 = vmatpush1.msra.mxu0 0.0
    %73 = vmatprep.subr.mxu0 0.0
    %74 = vmatpush1.msra.mxu0 0.0
    %75 = vmatprep.subr.mxu0 0.0
    %76 = vmatpush1.msra.mxu0 0.0
    %77 = vmatprep.subr.mxu0 0.0
    %78 = vmatpush1.msra.mxu0 0.0
    %79 = vmatprep.subr.mxu0 0.0
    %80 = vmatpush1.msra.mxu0 0.0
    %81 = vmatprep.subr.mxu0 0.0
    %82 = vmatpush1.msra.mxu0 0.0
    %83 = vmatprep.subr.mxu0 0.0
    %84 = vmatpush1.msra.mxu0 0.0
    %85 = vmatprep.subr.mxu0 0.0
    %86 = vmatpush1.msra.mxu0 0.0
    %87 = vmatprep.subr.mxu0 0.0
    %88 = vmatpush1.msra.mxu0 0.0
    %89 = vmatprep.subr.mxu0 0.0
    %90 = vmatpush1.msra.mxu0 0.0
    %91 = vmatprep.subr.mxu0 0.0
    %92 = vmatpush1.msra.mxu0 0.0
    %93 = vmatprep.subr.mxu0 0.0
    %94 = vmatpush1.msra.mxu0 0.0
    %95 = vmatprep.subr.mxu0 0.0
    %96 = vmatpush1.msra.mxu0 0.0
    %97 = vmatprep.subr.mxu0 0.0
    %98 = vmatpush1.msra.mxu0 0.0
    %99 = vmatprep.subr.mxu0 0.0
    %100 = vmatpush1.msra.mxu0 0.0
    %101 = vmatprep.subr.mxu0 0.0
    %102 = vmatpush1.msra.mxu0 0.0
    %103 = vmatprep.subr.mxu0 0.0
    %104 = vmatpush1.msra.mxu0 0.0
    %105 = vmatprep.subr.mxu0 0.0
    %106 = vmatpush1.msra.mxu0 0.0
    %107 = vmatprep.subr.mxu0 0.0
    %108 = vmatpush1.msra.mxu0 0.0
    %109 = vmatprep.subr.mxu0 0.0
    %110 = vmatpush1.msra.mxu0 0.0
    %111 = vmatprep.subr.mxu0 0.0
    %112 = vmatpush1.msra.mxu0 0.0
    %113 = vmatprep.subr.mxu0 0.0
    %114 = vmatpush1.msra.mxu0 0.0
    %115 = vmatprep.subr.mxu0 0.0
    %116 = vmatpush1.msra.mxu0 0.0
    %117 = vmatprep.subr.mxu0 0.0
    %118 = vmatpush1.msra.mxu0 0.0
    %119 = vmatprep.subr.mxu0 0.0
    %120 = vmatpush1.msra.mxu0 0.0
    %121 = vmatprep.mubr.f32.mxu0 0.0
    %122 = vmatmul.mubr.f32.gmra.mrb[0].mxu0 %v55
    %v123 = vpop.f32.mrb[0].mxu0
    %v124 = vadd.f32 %v51, %v123
    %v125 = vpop.f32.mrb[0].mxu0
    %126 = vdwg.mxu0
    %127 = vmax.xlane.f32.xlu0 %v124
    %v128 = vpop.xlane.xlu0 %127
    %v129 = vsub.f32 %v124, %v128
    %v130 = vmul.f32 %v129, 1.442695
    %v131 = vpow.pop %v130
    %132 = vadd.xlane.f32.xlu0 %v131
    %v133 = vpop.xlane.xlu0 %132
    %v134 = vlog2.pop %v133
    %v135 = vmul.f32 %v134, 0.6931472
    %v136 = vsub.f32 %v129, %v135
    %137 = vst [vmem:[#allocation7] sm:$0xff] %v136
    // Predicated region
    $region22: #{tpu_custom_call.1} parent=1 // pred_check
      _
    $region23: #{tpu_custom_call.1} parent=1 // pred_check_branch
      %139 = sbr.rel (0) target = $region25
    $region24: #{tpu_custom_call.1} parent=1 // pred_region
      %s141 = ssub.s32 128, 128
      %142 = vsyncadd [#allocation4], %s141
      %s144 = sshll.u32 [#allocation7], 4
      %s145 = int_to_ptr.vmem [resolvable:$true] %s144
      %147 = dma.vmem_to_hbm [thread:$0]  %s145, 128, %s3, [#allocation4]
    $region25: #{tpu_custom_call.1} parent=1 // pred_fallthru
      _
    // Predicated region
    $region26: #{tpu_custom_call.1} parent=1 // pred_check
      _
    $region27: #{tpu_custom_call.1} parent=1 // pred_check_branch
      %149 = sbr.rel (0) target = $region29
    $region28: #{tpu_custom_call.1} parent=1 // pred_region
      %150 = dma.done [#allocation4], 128
    $region29: #{tpu_custom_call.1} parent=1 // pred_fallthru
      _
    %151 = vsyncpa [#allocation3], 1
    %152 = vsyncpa [#allocation6], 1
    %153 = vsyncpa [#allocation4], 1

// kernel: tpu_custom_call.1
$region0: #{tpu_custom_call.1}
  #allocation0 [shape = 'u32[]', space=smem, size = 0x4, offset = 0x4, fixed_abs, tag = 'smem constant byte address 0x4 - core index']
  #allocation1 [shape = 'u32[144,128]{1,0:T(1,128)}', space=vmem, size = 0x12000, scoped, tag = 'internal scratch']
  %s0 = inlined_call_operand.hbm [shape: f32[8,32], index: 0, kind: input, shape index: {}]
  %s1 = inlined_call_operand.hbm [shape: f32[32,128], index: 1, kind: input, shape index: {}]
  %s2 = inlined_call_operand.vmem [shape: f32[1,128], index: 2, kind: input, shape index: {}]
  %s3 = inlined_call_operand.hbm [shape: f32[8,128], index: 3, kind: output, shape index: {}]
  %s4 = sld [smem:[#allocation0]]
  $region30: #{tpu_custom_call.1} parent=0
    _
  %s6 = ssub.s32 1, %s4
  %s7 = scalar_select 0, %s6, %s4
  $region1: #{tpu_custom_call.1} parent=0
    #allocation2 [shape = 'u8[4096]{0}', space=vmem, size = 0x1000, scoped, tag = 'input window, operand 0, single buffered']
    #allocation3 [shape = 's32[1]{0}', space=sflag, size = 0x4, scoped, tag = 'scoped memory for tpu_custom_call.1']
    #allocation4 [shape = 's32[1]{0}', space=sflag, size = 0x4, scoped, tag = 'scoped memory for tpu_custom_call.1']
    #allocation5 [shape = 'u8[16384]{0}', space=vmem, size = 0x4000, scoped, tag = 'input window, operand 1, single buffered']
    #allocation6 [shape = 's32[1]{0}', space=sflag, size = 0x4, scoped, tag = 'scoped memory for tpu_custom_call.1']
    #allocation7 [shape = 'u8[4096]{0}', space=vmem, size = 0x1000, scoped, tag = 'output window, operand 0, single buffered']
    %8 = vsyncpa [#allocation3], 0
    %9 = vsyncpa [#allocation6], 0
    %10 = vsyncpa [#allocation4], 0
    // Predicated region
    $region2: #{tpu_custom_call.1} parent=1 // pred_check
      _
    $region3: #{tpu_custom_call.1} parent=1 // pred_check_branch
      %12 = sbr.rel (0) target = $region5
    $region4: #{tpu_custom_call.1} parent=1 // pred_region
      %s14 = ssub.s32 128, 128
      %15 = vsyncadd [#allocation3], %s14
      %s17 = sshll.u32 [#allocation2], 4
      %s18 = int_to_ptr.vmem [resolvable:$true] %s17
      %20 = dma.hbm_to_vmem [thread:$0]  %s0, 128, %s18, [#allocation3]
    $region5: #{tpu_custom_call.1} parent=1 // pred_fallthru
      _
    // Predicated region
    $region6: #{tpu_custom_call.1} parent=1 // pred_check
      _
    $region7: #{tpu_custom_call.1} parent=1 // pred_check_branch
      %22 = sbr.rel (0) target = $region9
    $region8: #{tpu_custom_call.1} parent=1 // pred_region
      %s24 = ssub.s32 512, 512
      %25 = vsyncadd [#allocation6], %s24
      %s26 = sshll.u32 [#allocation5], 4
      %s27 = int_to_ptr.vmem [resolvable:$true] %s26
      %32 = dma.hbm_to_vmem [thread:$0]  %s1, 512, %s27, [#allocation6], 128, 128, 8
    $region9: #{tpu_custom_call.1} parent=1 // pred_fallthru
      _
    // Predicated region
    $region10: #{tpu_custom_call.1} parent=1 // pred_check
      _
    $region11: #{tpu_custom_call.1} parent=1 // pred_check_branch
      %34 = sbr.rel (0) target = $region13
    $region12: #{tpu_custom_call.1} parent=1 // pred_region
      _
    $region13: #{tpu_custom_call.1} parent=1 // pred_fallthru
      _
    // Predicated region
    $region14: #{tpu_custom_call.1} parent=1 // pred_check
      _
    $region15: #{tpu_custom_call.1} parent=1 // pred_check_branch
      %36 = sbr.rel (0) target = $region17
    $region16: #{tpu_custom_call.1} parent=1 // pred_region
      %37 = dma.done [#allocation3], 128
    $region17: #{tpu_custom_call.1} parent=1 // pred_fallthru
      _
    // Predicated region
    $region18: #{tpu_custom_call.1} parent=1 // pred_check
      _
    $region19: #{tpu_custom_call.1} parent=1 // pred_check_branch
      %39 = sbr.rel (0) target = $region21
    $region20: #{tpu_custom_call.1} parent=1 // pred_region
      %40 = dma.done [#allocation6], 512
    $region21: #{tpu_custom_call.1} parent=1 // pred_fallthru
      _
    %v41 = vld [vmem:[#allocation2] sm:$0xff]
    %v42 = vld [vmem:[#allocation5] sm:$0xff]
    %v43 = vld [vmem:[#allocation5 + $0x8] sm:$0xff]
    %v44 = vld [vmem:[#allocation5 + $0x10] sm:$0xff]
    %v45 = vld [vmem:[#allocation5 + $0x18] sm:$0xff]
    %v46 = vld [vmem:[%s2] sm:$0x1]
    %v48 = vlaneseq
    %v49 = vshrl.u32 %v48, 7
    %v50 = vsub.s32 0, %v49
    %v51 = vrot.slane %v46, %v50
    %vm53 = vcmask 261120
    %v55 = vsel %vm53, %v41, 0
    %57 = vmatprep.subr.mxu0 0.0
    %58 = vmatpush1.msra.mxu0 %v42
    %59 = vmatprep.subr.mxu0 0.0
    %60 = vmatpush1.msra.mxu0 %v43
    %61 = vmatprep.subr.mxu0 0.0
    %62 = vmatpush1.msra.mxu0 %v44
    %63 = vmatprep.subr.mxu0 0.0
    %64 = vmatpush1.msra.mxu0 %v45
    %65 = vmatprep.subr.mxu0 0.0
    %66 = vmatpush1.msra.mxu0 0.0
    %67 = vmatprep.subr.mxu0 0.0
    %68 = vmatpush1.msra.mxu0 0.0
    %69 = vmatprep.subr.mxu0 0.0
    %70 = vmatpush1.msra.mxu0 0.0
    %71 = vmatprep.subr.mxu0 0.0
    %72 = vmatpush1.msra.mxu0 0.0
    %73 = vmatprep.subr.mxu0 0.0
    %74 = vmatpush1.msra.mxu0 0.0
    %75 = vmatprep.subr.mxu0 0.0
    %76 = vmatpush1.msra.mxu0 0.0
    %77 = vmatprep.subr.mxu0 0.0
    %78 = vmatpush1.msra.mxu0 0.0
    %79 = vmatprep.subr.mxu0 0.0
    %80 = vmatpush1.msra.mxu0 0.0
    %81 = vmatprep.subr.mxu0 0.0
    %82 = vmatpush1.msra.mxu0 0.0
    %83 = vmatprep.subr.mxu0 0.0
    %84 = vmatpush1.msra.mxu0 0.0
    %85 = vmatprep.subr.mxu0 0.0
    %86 = vmatpush1.msra.mxu0 0.0
    %87 = vmatprep.subr.mxu0 0.0
    %88 = vmatpush1.msra.mxu0 0.0
    %89 = vmatprep.subr.mxu0 0.0
    %90 = vmatpush1.msra.mxu0 0.0
    %91 = vmatprep.subr.mxu0 0.0
    %92 = vmatpush1.msra.mxu0 0.0
    %93 = vmatprep.subr.mxu0 0.0
    %94 = vmatpush1.msra.mxu0 0.0
    %95 = vmatprep.subr.mxu0 0.0
    %96 = vmatpush1.msra.mxu0 0.0
    %97 = vmatprep.subr.mxu0 0.0
    %98 = vmatpush1.msra.mxu0 0.0
    %99 = vmatprep.subr.mxu0 0.0
    %100 = vmatpush1.msra.mxu0 0.0
    %101 = vmatprep.subr.mxu0 0.0
    %102 = vmatpush1.msra.mxu0 0.0
    %103 = vmatprep.subr.mxu0 0.0
    %104 = vmatpush1.msra.mxu0 0.0
    %105 = vmatprep.subr.mxu0 0.0
    %106 = vmatpush1.msra.mxu0 0.0
    %107 = vmatprep.subr.mxu0 0.0
    %108 = vmatpush1.msra.mxu0 0.0
    %109 = vmatprep.subr.mxu0 0.0
    %110 = vmatpush1.msra.mxu0 0.0
    %111 = vmatprep.subr.mxu0 0.0
    %112 = vmatpush1.msra.mxu0 0.0
    %113 = vmatprep.subr.mxu0 0.0
    %114 = vmatpush1.msra.mxu0 0.0
    %115 = vmatprep.subr.mxu0 0.0
    %116 = vmatpush1.msra.mxu0 0.0
    %117 = vmatprep.subr.mxu0 0.0
    %118 = vmatpush1.msra.mxu0 0.0
    %119 = vmatprep.subr.mxu0 0.0
    %120 = vmatpush1.msra.mxu0 0.0
    %121 = vmatprep.mubr.f32.mxu0 0.0
    %122 = vmatmul.mubr.f32.gmra.mrb[0].mxu0 %v55
    %v123 = vpop.f32.mrb[0].mxu0
    %v124 = vadd.f32 %v51, %v123
    %v125 = vpop.f32.mrb[0].mxu0
    %126 = vdwg.mxu0
    %127 = vmax.xlane.f32.xlu0 %v124
    %v128 = vpop.xlane.xlu0 %127
    %v129 = vsub.f32 %v124, %v128
    %v130 = vmul.f32 %v129, 1.442695
    %v131 = vpow.pop %v130
    %132 = vadd.xlane.f32.xlu0 %v131
    %v133 = vpop.xlane.xlu0 %132
    %v134 = vlog2.pop %v133
    %v135 = vmul.f32 %v134, 0.6931472
    %v136 = vsub.f32 %v129, %v135
    %137 = vst [vmem:[#allocation7] sm:$0xff] %v136
    // Predicated region
    $region22: #{tpu_custom_call.1} parent=1 // pred_check
      _
    $region23: #{tpu_custom_call.1} parent=1 // pred_check_branch
      %139 = sbr.rel (0) target = $region25
    $region24: #{tpu_custom_call.1} parent=1 // pred_region
      %s141 = ssub.s32 128, 128
      %142 = vsyncadd [#allocation4], %s141
      %s144 = sshll.u32 [#allocation7], 4
      %s145 = int_to_ptr.vmem [resolvable:$true] %s144
      %147 = dma.vmem_to_hbm [thread:$0]  %s145, 128, %s3, [#allocation4]
    $region25: #{tpu_custom_call.1} parent=1 // pred_fallthru
      _
    // Predicated region
    $region26: #{tpu_custom_call.1} parent=1 // pred_check
      _
    $region27: #{tpu_custom_call.1} parent=1 // pred_check_branch
      %149 = sbr.rel (0) target = $region29
    $region28: #{tpu_custom_call.1} parent=1 // pred_region
      %150 = dma.done [#allocation4], 128
    $region29: #{tpu_custom_call.1} parent=1 // pred_fallthru
      _
    %151 = vsyncpa [#allocation3], 1
    %152 = vsyncpa [#allocation6], 1
    %153 = vsyncpa [#allocation4], 1

</llo_original>
